<compile_context>
chip_gen: v7x
topology: tpu7x:2x2x1
jax: 0.10.0
libtpu: 0.0.40
codegen_flags: <defaults>
</compile_context>

<pallas_src>
import functools

import jax
import jax.numpy as jnp
from jax.experimental import pallas as pl
from jax.experimental.pallas import tpu as pltpu

# ------------------------- model hyper-parameters ---------------------------
IN_CHANNELS = 8
HIDDEN_CHANNELS = 64
OUT_CHANNELS = 32
HEADS = 2
C0 = HIDDEN_CHANNELS // HEADS       # 32
C1 = OUT_CHANNELS // HEADS          # 16
BN_EPS = 1e-5
LEAKY_SLOPE = 0.2                   # GATConv default negative_slope
NEG_BIG = -1e30                     # python float -> literal, NOT a captured const

VMEM_SPEC = pl.BlockSpec(memory_space=pltpu.MemorySpace.VMEM)


# ------------------------------ kernels --------------------------------------


def proj0_kernel(x_ref, w_in_ref, b_in_ref, wext_ref, h_ref, xpe_ref):
    """input_proj + ReLU, then fused GAT-0 projection  h @ [W*s | W@a_src | W@a_dst]."""
    h = jnp.dot(x_ref[...], w_in_ref[...], preferred_element_type=jnp.float32)
    h = jnp.maximum(h + b_in_ref[...], 0.0)
    h_ref[...] = h
    xpe_ref[...] = jnp.dot(h, wext_ref[...], preferred_element_type=jnp.float32)


def gat_agg_kernel(xp_ref, asrcT_ref, adst_ref, mask_ref, bias_ref, *refs,
                   heads, cph, residual, fuse_next):
    """One target-row tile of the GAT aggregation (softmax over sources).

    xp_ref    : [N, H*C]      BN-folded projected features (all source nodes, resident)
    asrcT_ref : [H, N]        source attention logits, lane-major (resident)
    adst_ref  : [tile, H]     target attention logits for this tile
    mask_ref  : [tile, N]     additive edge mask (0 / -1e30), bf16
    bias_ref  : [1, H*C]      folded (bias*s + shift)
    refs (in order):
        [h_tile_ref]                  if residual   (input, [tile, H*C])
        [wnext_ref, xpe_out_ref, g_scratch] if fuse_next (next-layer fused projection)
        [out_ref]                     otherwise
    """
    idx = 0
    if residual:
        h_tile = refs[idx][...]
        idx += 1
    else:
        h_tile = None
    if fuse_next:
        wnext_ref = refs[idx]
        xpe_ref = refs[idx + 1]
        g_ref = refs[idx + 2]            # VMEM scratch holding g0 tile
    else:
        g_ref = refs[idx]                # the layer output ref

    xp = xp_ref[...]                                   # [N, H*C] f32
    asrcT = asrcT_ref[...]                             # [H, N]   f32
    adst = adst_ref[...]                               # [tile, H] f32
    mask = mask_ref[...].astype(jnp.float32)           # [tile, N]
    bias = bias_ref[...]                               # [1, H*C]

    for hd in range(heads):
        sl_lo, sl_hi = hd * cph, (hd + 1) * cph
        # raw attention scores e[i, j] = adst[i, hd] + asrc[j, hd]
        e = adst[:, hd:hd + 1] + asrcT[hd:hd + 1, :]             # [tile, N]
        # LeakyReLU then additive mask (non-edges -> ~-1e30)
        e = jnp.where(e > 0.0, e, LEAKY_SLOPE * e) + mask
        m = jnp.max(e, axis=1, keepdims=True)
        p = jnp.exp(e - m)                                       # masked -> exactly 0
        denom = jnp.sum(p, axis=1, keepdims=True)                # >= exp(self-loop) > 0
        # aggregate first, normalize after (row scaling commutes with the matmul)
        agg = jnp.dot(p, xp[:, sl_lo:sl_hi], preferred_element_type=jnp.float32)
        v = agg * (1.0 / denom) + bias[:, sl_lo:sl_hi]
        if residual:
            v = v + h_tile[:, sl_lo:sl_hi]
        g_ref[:, sl_lo:sl_hi] = jnp.maximum(v, 0.0)              # ReLU, per-head slice

    if fuse_next:
        # Next layer's fused projection on this tile: no HBM round-trip for g0.
        xpe_ref[...] = jnp.dot(g_ref[...], wnext_ref[...],
                               preferred_element_type=jnp.float32)


def head_kernel(g_ref, pool_ref, wf1_ref, bf1_ref, wf2_ref, bf2_ref,
                wf3_ref, bf3_ref, out_ref):
    """global_mean_pool (as matmul with row-normalized membership) + BN-folded MLP."""
    pooled = jnp.dot(pool_ref[...], g_ref[...], preferred_element_type=jnp.float32)
    z = jnp.dot(pooled, wf1_ref[...], preferred_element_type=jnp.float32) + bf1_ref[...]
    z = jnp.maximum(z, 0.0)
    z = jnp.dot(z, wf2_ref[...], preferred_element_type=jnp.float32) + bf2_ref[...]
    z = jnp.maximum(z, 0.0)
    out_ref[...] = (jnp.dot(z, wf3_ref[...], preferred_element_type=jnp.float32)
                    + bf3_ref[...])


# --------------------------- pallas_call helpers ------------------------------


def _gat_agg_call(xp, asrcT, adst, mask, bias, h_res, wnext, *, cph, row_tile):
    """Row-tiled, megacore-parallel GAT aggregation layer.

    If `wnext` is not None, the next layer's fused projection is computed in the
    epilogue and the call returns xpe_next instead of the aggregated features.
    """
    n_pad = xp.shape[0]
    hc = HEADS * cph
    grid = (n_pad // row_tile,)

    in_specs = [
        pl.BlockSpec((n_pad, hc), lambda i: (0, 0)),          # xp      (resident)
        pl.BlockSpec((HEADS, n_pad), lambda i: (0, 0)),       # asrcT   (resident)
        pl.BlockSpec((row_tile, HEADS), lambda i: (i, 0)),    # adst    (tiled)
        pl.BlockSpec((row_tile, n_pad), lambda i: (i, 0)),    # mask    (tiled, bf16)
        pl.BlockSpec((1, hc), lambda i: (0, 0)),              # bias    (resident)
    ]
    args = [xp, asrcT, adst, mask, bias]

    residual = h_res is not None
    if residual:
        in_specs.append(pl.BlockSpec((row_tile, hc), lambda i: (i, 0)))
        args.append(h_res)

    fuse_next = wnext is not None
    scratch_shapes = []
    if fuse_next:
        n_ext = wnext.shape[1]
        in_specs.append(pl.BlockSpec((hc, n_ext), lambda i: (0, 0)))  # wnext (resident)
        args.append(wnext)
        out_width = n_ext
        scratch_shapes = [pltpu.VMEM((row_tile, hc), jnp.float32)]
    else:
        out_width = hc

    return pl.pallas_call(
        functools.partial(gat_agg_kernel, heads=HEADS, cph=cph,
                          residual=residual, fuse_next=fuse_next),
        grid=grid,
        in_specs=in_specs,
        out_specs=pl.BlockSpec((row_tile, out_width), lambda i: (i, 0)),
        out_shape=jax.ShapeDtypeStruct((n_pad, out_width), jnp.float32),
        scratch_shapes=scratch_shapes,
        compiler_params=pltpu.CompilerParams(
            dimension_semantics=("parallel",),        # shards rows over megacore TCs
            vmem_limit_bytes=48 * 1024 * 1024,        # fits all generations (<=64MiB)
        ),
    )(*args)


# ------------------------------ wrapper ---------------------------------------


def gnn_forward(x, edge_index, batch, raw_params, *, num_graphs, row_tile=128):
    """x: [N, IN] f32, edge_index: [2, E] i32 (row0=src, row1=tgt),
    batch: [N] i32 graph id per node. Returns [num_graphs] f32."""
    assert row_tile % 8 == 0
    n = x.shape[0]
    n_pad = ((n + row_tile - 1) // row_tile) * row_tile

    kp = fold_params(raw_params)

    # ---- glue: pad nodes, additive bf16 edge mask (0 / -1e30), pooling matrix ----
    x_pad = jnp.pad(x.astype(jnp.float32), ((0, n_pad - n), (0, 0)))
    ar = jnp.arange(n_pad)
    mask = jnp.full((n_pad, n_pad), NEG_BIG, jnp.bfloat16)
    mask = mask.at[edge_index[1], edge_index[0]].set(0.0)     # target row, source col
    mask = mask.at[ar, ar].set(0.0)                           # add_self_loops=True

    if n_pad > n:
        batch_pad = jnp.concatenate(
            [batch, jnp.full((n_pad - n,), num_graphs, jnp.int32)])
    else:
        batch_pad = batch
    onehot = (batch_pad[None, :] == jnp.arange(num_graphs)[:, None]).astype(jnp.float32)
    pool = onehot / jnp.maximum(onehot.sum(axis=1, keepdims=True), 1.0)

    hc0 = HEADS * C0
    hc1 = HEADS * C1

    # ---- layer 0: fused projection (input_proj + relu + W_ext matmul) ----
    h, xpe0 = pl.pallas_call(
        proj0_kernel,
        out_shape=(jax.ShapeDtypeStruct((n_pad, HIDDEN_CHANNELS), jnp.float32),
                   jax.ShapeDtypeStruct((n_pad, hc0 + 2 * HEADS), jnp.float32)),
        in_specs=[VMEM_SPEC] * 4,
        out_specs=(VMEM_SPEC, VMEM_SPEC),
    )(x_pad, kp["w_in"], kp["b_in"], kp["wext0"])

    xp0 = xpe0[:, :hc0]
    asrcT0 = jnp.transpose(xpe0[:, hc0:hc0 + HEADS])          # [H, N] lane-major glue
    adst0 = xpe0[:, hc0 + HEADS:hc0 + 2 * HEADS]              # [N, H]

    # ---- layer 0: aggregation + folded BN + residual + ReLU,
    #      with layer-1's fused projection (g0 @ wext1) in the epilogue ----
    xpe1 = _gat_agg_call(xp0, asrcT0, adst0, mask, kp["b0"], h, kp["wext1"],
                         cph=C0, row_tile=row_tile)

    xp1 = xpe1[:, :hc1]
    asrcT1 = jnp.transpose(xpe1[:, hc1:hc1 + HEADS])
    adst1 = xpe1[:, hc1 + HEADS:hc1 + 2 * HEADS]

    # ---- layer 1: aggregation + folded BN + ReLU (no residual: 32 != 64) ----
    g1 = _gat_agg_call(xp1, asrcT1, adst1, mask, kp["b1"], None, None,
                       cph=C1, row_tile=row_tile)

    # ---- pooling + MLP head (BN folded into fc1/fc2) ----
    out = pl.pallas_call(
        head_kernel,
        out_shape=jax.ShapeDtypeStruct((num_graphs, 1), jnp.float32),
        in_specs=[VMEM_SPEC] * 8,
        out_specs=VMEM_SPEC,
    )(g1, pool, kp["wf1"], kp["bf1"], kp["wf2"], kp["bf2"], kp["wf3"], kp["bf3"])

    return out[:, 0]       # x.squeeze(-1)


# --------------------------- parameter handling --------------------------------


def _glorot(key, shape):
    fan_in, fan_out = shape[0], shape[-1]
    lim = (6.0 / (fan_in + fan_out)) ** 0.5
    return jax.random.uniform(key, shape, jnp.float32, -lim, lim)


def _bn_stats(key, n):
    k1, k2, k3, k4 = jax.random.split(key, 4)
    gamma = 1.0 + 0.1 * jax.random.normal(k1, (n,), jnp.float32)
    beta = 0.1 * jax.random.normal(k2, (n,), jnp.float32)
    mean = 0.1 * jax.random.normal(k3, (n,), jnp.float32)
    var = jax.random.uniform(k4, (n,), jnp.float32, 0.5, 1.5)
    return (gamma, beta, mean, var)


def make_params(key):
    ks = jax.random.split(key, 20)
    return dict(
        w_in=_glorot(ks[0], (IN_CHANNELS, HIDDEN_CHANNELS)),
        b_in=0.01 * jax.random.normal(ks[1], (HIDDEN_CHANNELS,), jnp.float32),
        w0=_glorot(ks[2], (HIDDEN_CHANNELS, HEADS * C0)),
        att_src0=_glorot(ks[3], (HEADS, C0)),
        att_dst0=_glorot(ks[4], (HEADS, C0)),
        b0=0.01 * jax.random.normal(ks[5], (HEADS * C0,), jnp.float32),
        bn0=_bn_stats(ks[6], HIDDEN_CHANNELS),
        w1=_glorot(ks[7], (HIDDEN_CHANNELS, HEADS * C1)),
        att_src1=_glorot(ks[8], (HEADS, C1)),
        att_dst1=_glorot(ks[9], (HEADS, C1)),
        b1=0.01 * jax.random.normal(ks[10], (HEADS * C1,), jnp.float32),
        bn1=_bn_stats(ks[11], OUT_CHANNELS),
        wf1=_glorot(ks[12], (OUT_CHANNELS, HIDDEN_CHANNELS)),
        bf1=0.01 * jax.random.normal(ks[13], (HIDDEN_CHANNELS,), jnp.float32),
        bn_fc1=_bn_stats(ks[14], HIDDEN_CHANNELS),
        wf2=_glorot(ks[15], (HIDDEN_CHANNELS, HIDDEN_CHANNELS // 2)),
        bf2=0.01 * jax.random.normal(ks[16], (HIDDEN_CHANNELS // 2,), jnp.float32),
        bn_fc2=_bn_stats(ks[17], HIDDEN_CHANNELS // 2),
        wf3=_glorot(ks[18], (HIDDEN_CHANNELS // 2, 1)),
        bf3=0.01 * jax.random.normal(ks[19], (1,), jnp.float32),
    )


def fold_params(p):
    """Fold eval-mode BatchNorm into weights and build the fused GAT projections."""
    def bn_fold(stats):
        gamma, beta, mean, var = stats
        s = gamma / jnp.sqrt(var + BN_EPS)
        return s, beta - mean * s

    def block_diag(att):          # [H, C] -> [H*C, H]
        h_, c_ = att.shape
        m = jnp.zeros((h_ * c_, h_), jnp.float32)
        for hh in range(h_):
            m = m.at[hh * c_:(hh + 1) * c_, hh].set(att[hh])
        return m

    s0, t0 = bn_fold(p["bn0"])
    # aggregation columns carry the BN scale; attention columns stay UNscaled
    wext0 = jnp.concatenate([p["w0"] * s0[None, :],
                             p["w0"] @ block_diag(p["att_src0"]),
                             p["w0"] @ block_diag(p["att_dst0"])], axis=1)
    b0 = (p["b0"] * s0 + t0)[None, :]

    s1, t1 = bn_fold(p["bn1"])
    wext1 = jnp.concatenate([p["w1"] * s1[None, :],
                             p["w1"] @ block_diag(p["att_src1"]),
                             p["w1"] @ block_diag(p["att_dst1"])], axis=1)
    b1 = (p["b1"] * s1 + t1)[None, :]

    sf1, tf1 = bn_fold(p["bn_fc1"])
    sf2, tf2 = bn_fold(p["bn_fc2"])

    return dict(
        w_in=p["w_in"], b_in=p["b_in"][None, :],
        wext0=wext0, b0=b0,
        wext1=wext1, b1=b1,
        wf1=p["wf1"] * sf1[None, :], bf1=(p["bf1"] * sf1 + tf1)[None, :],
        wf2=p["wf2"] * sf2[None, :], bf2=(p["bf2"] * sf2 + tf2)[None, :],
        wf3=p["wf3"], bf3=p["bf3"][None, :],
    )


# ------------------------------ JAX reference ----------------------------------


def reference_forward(x, edge_index, batch, p, *, num_graphs):
    """Pure-JAX mirror of the PyTorch module (eval mode), unfused BN, unpadded."""
    n = x.shape[0]
    adj = jnp.zeros((n, n), jnp.float32).at[edge_index[1], edge_index[0]].set(1.0)
    adj = jnp.maximum(adj, jnp.eye(n, dtype=jnp.float32))

    def bn(v, stats):
        gamma, beta, mean, var = stats
        return (v - mean) / jnp.sqrt(var + BN_EPS) * gamma + beta

    def gat(h, w, att_s, att_d, b, cph):
        xp = h @ w
        outs = []
        for hh in range(HEADS):
            xph = xp[:, hh * cph:(hh + 1) * cph]
            asrc = xph @ att_s[hh]
            adst = xph @ att_d[hh]
            e = adst[:, None] + asrc[None, :]
            e = jnp.where(e > 0, e, LEAKY_SLOPE * e)
            e = jnp.where(adj > 0, e, NEG_BIG)
            pr = jnp.exp(e - e.max(axis=1, keepdims=True))
            pr = jnp.where(adj > 0, pr, 0.0)
            alpha = pr / pr.sum(axis=1, keepdims=True)
            outs.append(alpha @ xph)
        return jnp.concatenate(outs, axis=1) + b[None, :]

    h = jax.nn.relu(x @ p["w_in"] + p["b_in"][None, :])
    ident = h
    g = bn(gat(h, p["w0"], p["att_src0"], p["att_dst0"], p["b0"], C0), p["bn0"])
    g = jax.nn.relu(g + ident)
    g = bn(gat(g, p["w1"], p["att_src1"], p["att_dst1"], p["b1"], C1), p["bn1"])
    g = jax.nn.relu(g)

    onehot = (batch[None, :] == jnp.arange(num_graphs)[:, None]).astype(jnp.float32)
    pool = onehot / jnp.maximum(onehot.sum(axis=1, keepdims=True), 1.0)
    pooled = pool @ g

    z = jax.nn.relu(bn(pooled @ p["wf1"] + p["bf1"][None, :], p["bn_fc1"]))
    z = jax.nn.relu(bn(z @ p["wf2"] + p["bf2"][None, :], p["bn_fc2"]))
    z = z @ p["wf3"] + p["bf3"][None, :]
    return z[:, 0]


# ---------------------------------- main ----------------------------------------

if __name__ == "__main__":
    key = jax.random.PRNGKey(0)
    k_x, k_p = jax.random.split(key)

    num_graphs = 2
    nodes_per_graph = 15                 # N=30 -> padded to 32, 2 row tiles of 16
    n_nodes = num_graphs * nodes_per_graph

    # Deterministic synthetic graph: a bidirectional ring inside each graph.
    edges = []
    for g in range(num_graphs):
        base = g * nodes_per_graph
        for kk in range(nodes_per_graph):
            s = base + kk
            t = base + (kk + 1) % nodes_per_graph
            edges.append((s, t))
            edges.append((t, s))
    edge_index = jnp.array(edges, dtype=jnp.int32).T          # [2, E]
    batch = jnp.repeat(jnp.arange(num_graphs, dtype=jnp.int32), nodes_per_graph)
    x = jax.random.normal(k_x, (n_nodes, IN_CHANNELS), jnp.float32)

    raw_params = make_params(k_p)

    out = gnn_forward(x, edge_index, batch, raw_params,
                      num_graphs=num_graphs, row_tile=16)
    out = jax.block_until_ready(out)

    ref = reference_forward(x, edge_index, batch, raw_params, num_graphs=num_graphs)
    assert out.shape == (num_graphs,)
    assert jnp.allclose(out, ref, rtol=1e-3, atol=1e-3), (out, ref)

    print("KERNEL_OK")
</pallas_src>

<mosaic_0001>
module attributes {stable_mosaic.version = 11 : i64} {
  func.func @proj0_kernel(%arg0: memref<32x8xf32, #tpu.memory_space<vmem>>, %arg1: memref<8x64xf32, #tpu.memory_space<vmem>>, %arg2: memref<1x64xf32, #tpu.memory_space<vmem>>, %arg3: memref<64x68xf32, #tpu.memory_space<vmem>>, %arg4: memref<32x64xf32, #tpu.memory_space<vmem>>, %arg5: memref<32x68xf32, #tpu.memory_space<vmem>>) attributes {dimension_semantics = [], scalar_prefetch = 0 : i64, scratch_operands = 0 : i64, tpu.core_type = #tpu.core_type<tc>} {
    %c0 = arith.constant 0 : index
    %c0_0 = arith.constant 0 : index
    %0 = vector.load %arg0[%c0, %c0_0] : memref<32x8xf32, #tpu.memory_space<vmem>>, vector<32x8xf32>
    %c0_1 = arith.constant 0 : index
    %c0_2 = arith.constant 0 : index
    %1 = vector.load %arg1[%c0_1, %c0_2] : memref<8x64xf32, #tpu.memory_space<vmem>>, vector<8x64xf32>
    %cst = arith.constant dense<0.000000e+00> : vector<32x64xf32>
    %2 = tpu.matmul %0, %1, %cst {dimension_numbers = #tpu.dot_dimension_numbers<[1], [0], [0], [1], [0, 0, 1, 1], [], []>} : vector<32x8xf32>, vector<8x64xf32>, vector<32x64xf32> -> vector<32x64xf32>
    %c0_3 = arith.constant 0 : index
    %c0_4 = arith.constant 0 : index
    %3 = vector.load %arg2[%c0_3, %c0_4] : memref<1x64xf32, #tpu.memory_space<vmem>>, vector<1x64xf32>
    %4 = vector.broadcast %3 : vector<1x64xf32> to vector<32x64xf32>
    %5 = arith.addf %2, %4 : vector<32x64xf32>
    %cst_5 = arith.constant 0.000000e+00 : f32
    %6 = vector.broadcast %cst_5 : f32 to vector<32x64xf32>
    %7 = arith.maximumf %5, %6 : vector<32x64xf32>
    %c0_6 = arith.constant 0 : index
    %c0_7 = arith.constant 0 : index
    %8 = vector.load %arg4[%c0_6, %c0_7] : memref<32x64xf32, #tpu.memory_space<vmem>>, vector<32x64xf32>
    tpu.vector_store %arg4[%c0_6, %c0_7], %7 {strides = array<i32>} : memref<32x64xf32, #tpu.memory_space<vmem>>, vector<32x64xf32>,
    %c0_8 = arith.constant 0 : index
    %c0_9 = arith.constant 0 : index
    %9 = vector.load %arg3[%c0_8, %c0_9] : memref<64x68xf32, #tpu.memory_space<vmem>>, vector<64x68xf32>
    %cst_10 = arith.constant dense<0.000000e+00> : vector<32x68xf32>
    %10 = tpu.matmul %7, %9, %cst_10 {dimension_numbers = #tpu.dot_dimension_numbers<[1], [0], [0], [1], [0, 0, 1, 1], [], []>} : vector<32x64xf32>, vector<64x68xf32>, vector<32x68xf32> -> vector<32x68xf32>
    %c0_11 = arith.constant 0 : index
    %c0_12 = arith.constant 0 : index
    %11 = vector.load %arg5[%c0_11, %c0_12] : memref<32x68xf32, #tpu.memory_space<vmem>>, vector<32x68xf32>
    tpu.vector_store %arg5[%c0_11, %c0_12], %10 {strides = array<i32>} : memref<32x68xf32, #tpu.memory_space<vmem>>, vector<32x68xf32>,
    return
  }
}

</mosaic_0001>

<llo_original>
// kernel: tpu_custom_call.1
$region0: #{tpu_custom_call.1}
  #allocation0 [shape = 'u32[]', space=smem, size = 0x4, offset = 0x4, fixed_abs, tag = 'smem constant byte address 0x4 - core index']
  #allocation1 [shape = 'u32[144,128]{1,0:T(1,128)}', space=vmem, size = 0x12000, scoped, tag = 'internal scratch']
  %s0 = inlined_call_operand.vmem [shape: f32[32,8], index: 0, kind: input, shape index: {}]
  %s1 = inlined_call_operand.vmem [shape: f32[8,64], index: 1, kind: input, shape index: {}]
  %s2 = inlined_call_operand.vmem [shape: f32[1,64], index: 2, kind: input, shape index: {}]
  %s3 = inlined_call_operand.hbm [shape: f32[64,68], index: 3, kind: input, shape index: {}]
  %s4 = inlined_call_operand.hbm [shape: f32[32,64], index: 4, kind: output, shape index: {0}]
  %s5 = inlined_call_operand.hbm [shape: f32[32,68], index: 5, kind: output, shape index: {1}]
  %6 = xla_tuple %s4, %s5
  %s7 = sld [smem:[#allocation0]]
  $region38: #{tpu_custom_call.1} parent=0
    _
  %s9 = ssub.s32 1, %s7
  %s10 = scalar_select 0, %s9, %s7
  $region1: #{tpu_custom_call.1} parent=0
    #allocation2 [shape = 'u8[32768]{0}', space=vmem, size = 0x8000, scoped, tag = 'input window, operand 3, single buffered']
    #allocation3 [shape = 's32[1]{0}', space=sflag, size = 0x4, scoped, tag = 'scoped memory for tpu_custom_call.1']
    #allocation4 [shape = 's32[1]{0}', space=sflag, size = 0x4, scoped, tag = 'scoped memory for tpu_custom_call.1']
    #allocation5 [shape = 'u8[16384]{0}', space=vmem, size = 0x4000, scoped, tag = 'output window, operand 0, single buffered']
    #allocation6 [shape = 'u8[16384]{0}', space=vmem, size = 0x4000, scoped, tag = 'output window, operand 1, single buffered']
    #allocation7 [shape = 's32[1]{0}', space=sflag, size = 0x4, scoped, tag = 'scoped memory for tpu_custom_call.1']
    %11 = vsyncpa [#allocation3], 0
    %12 = vsyncpa [#allocation4], 0
    %13 = vsyncpa [#allocation7], 0
    // Predicated region
    $region2: #{tpu_custom_call.1} parent=1 // pred_check
      _
    $region3: #{tpu_custom_call.1} parent=1 // pred_check_branch
      %15 = sbr.rel (0) target = $region5
    $region4: #{tpu_custom_call.1} parent=1 // pred_region
      _
    $region5: #{tpu_custom_call.1} parent=1 // pred_fallthru
      _
    // Predicated region
    $region6: #{tpu_custom_call.1} parent=1 // pred_check
      _
    $region7: #{tpu_custom_call.1} parent=1 // pred_check_branch
      %17 = sbr.rel (0) target = $region9
    $region8: #{tpu_custom_call.1} parent=1 // pred_region
      _
    $region9: #{tpu_custom_call.1} parent=1 // pred_fallthru
      _
    // Predicated region
    $region10: #{tpu_custom_call.1} parent=1 // pred_check
      _
    $region11: #{tpu_custom_call.1} parent=1 // pred_check_branch
      %19 = sbr.rel (0) target = $region13
    $region12: #{tpu_custom_call.1} parent=1 // pred_region
      _
    $region13: #{tpu_custom_call.1} parent=1 // pred_fallthru
      _
    // Predicated region
    $region14: #{tpu_custom_call.1} parent=1 // pred_check
      _
    $region15: #{tpu_custom_call.1} parent=1 // pred_check_branch
      %21 = sbr.rel (0) target = $region17
    $region16: #{tpu_custom_call.1} parent=1 // pred_region
      %s23 = ssub.s32 1024, 1024
      %24 = vsyncadd [#allocation3], %s23
      %s25 = sshll.u32 [#allocation2], 4
      %s26 = int_to_ptr.vmem [resolvable:$true] %s25
      %31 = dma.hbm_to_vmem [thread:$0]  %s3, 1024, %s26, [#allocation3], 128, 128, 8
    $region17: #{tpu_custom_call.1} parent=1 // pred_fallthru
      _
    // Predicated region
    $region18: #{tpu_custom_call.1} parent=1 // pred_check
      _
    $region19: #{tpu_custom_call.1} parent=1 // pred_check_branch
      %33 = sbr.rel (0) target = $region21
    $region20: #{tpu_custom_call.1} parent=1 // pred_region
      %34 = dma.done [#allocation3], 1024
    $region21: #{tpu_custom_call.1} parent=1 // pred_fallthru
      _
    %v35 = vld [vmem:[%s0] sm:$0xff]
    %v36 = vld [vmem:[%s0 + $0x8] sm:$0xff]
    %v37 = vld [vmem:[%s0 + $0x10] sm:$0xff]
    %v38 = vld [vmem:[%s0 + $0x18] sm:$0xff]
    %v39 = vld [vmem:[%s1] sm:$0xff]
    %v40 = vld [vmem:[%s2] sm:$0x1]
    %v42 = vlaneseq
    %v43 = vshrl.u32 %v42, 7
    %v44 = vsub.s32 0, %v43
    %v45 = vrot.slane %v40, %v44
    %vm47 = vcmask 64512
    %v49 = vsel %vm47, %v35, 0
    %v52 = vsel %vm47, %v36, 0
    %v55 = vsel %vm47, %v37, 0
    %v58 = vsel %vm47, %v38, 0
    %60 = vmatprep.subr.mxu0 0.0
    %61 = vmatpush1.msra.mxu0 %v39
    %62 = vmatprep.subr.mxu0 0.0
    %63 = vmatpush1.msra.mxu0 0.0
    %64 = vmatprep.subr.mxu0 0.0
    %65 = vmatpush1.msra.mxu0 0.0
    %66 = vmatprep.subr.mxu0 0.0
    %67 = vmatpush1.msra.mxu0 0.0
    %68 = vmatprep.subr.mxu0 0.0
    %69 = vmatpush1.msra.mxu0 0.0
    %70 = vmatprep.subr.mxu0 0.0
    %71 = vmatpush1.msra.mxu0 0.0
    %72 = vmatprep.subr.mxu0 0.0
    %73 = vmatpush1.msra.mxu0 0.0
    %74 = vmatprep.subr.mxu0 0.0
    %75 = vmatpush1.msra.mxu0 0.0
    %76 = vmatprep.subr.mxu0 0.0
    %77 = vmatpush1.msra.mxu0 0.0
    %78 = vmatprep.subr.mxu0 0.0
    %79 = vmatpush1.msra.mxu0 0.0
    %80 = vmatprep.subr.mxu0 0.0
    %81 = vmatpush1.msra.mxu0 0.0
    %82 = vmatprep.subr.mxu0 0.0
    %83 = vmatpush1.msra.mxu0 0.0
    %84 = vmatprep.subr.mxu0 0.0
    %85 = vmatpush1.msra.mxu0 0.0
    %86 = vmatprep.subr.mxu0 0.0
    %87 = vmatpush1.msra.mxu0 0.0
    %88 = vmatprep.subr.mxu0 0.0
    %89 = vmatpush1.msra.mxu0 0.0
    %90 = vmatprep.subr.mxu0 0.0
    %91 = vmatpush1.msra.mxu0 0.0
    %92 = vmatprep.subr.mxu0 0.0
    %93 = vmatpush1.msra.mxu0 0.0
    %94 = vmatprep.subr.mxu0 0.0
    %95 = vmatpush1.msra.mxu0 0.0
    %96 = vmatprep.subr.mxu0 0.0
    %97 = vmatpush1.msra.mxu0 0.0
    %98 = vmatprep.subr.mxu0 0.0
    %99 = vmatpush1.msra.mxu0 0.0
    %100 = vmatprep.subr.mxu0 0.0
    %101 = vmatpush1.msra.mxu0 0.0
    %102 = vmatprep.subr.mxu0 0.0
    %103 = vmatpush1.msra.mxu0 0.0
    %104 = vmatprep.subr.mxu0 0.0
    %105 = vmatpush1.msra.mxu0 0.0
    %106 = vmatprep.subr.mxu0 0.0
    %107 = vmatpush1.msra.mxu0 0.0
    %108 = vmatprep.subr.mxu0 0.0
    %109 = vmatpush1.msra.mxu0 0.0
    %110 = vmatprep.subr.mxu0 0.0
    %111 = vmatpush1.msra.mxu0 0.0
    %112 = vmatprep.subr.mxu0 0.0
    %113 = vmatpush1.msra.mxu0 0.0
    %114 = vmatprep.subr.mxu0 0.0
    %115 = vmatpush1.msra.mxu0 0.0
    %116 = vmatprep.subr.mxu0 0.0
    %117 = vmatpush1.msra.mxu0 0.0
    %118 = vmatprep.subr.mxu0 0.0
    %119 = vmatpush1.msra.mxu0 0.0
    %120 = vmatprep.subr.mxu0 0.0
    %121 = vmatpush1.msra.mxu0 0.0
    %122 = vmatprep.subr.mxu0 0.0
    %123 = vmatpush1.msra.mxu0 0.0
    %124 = vmatprep.mubr.f32.mxu0 0.0
    %125 = vmatmul.mubr.f32.gmra.mrb[0].mxu0 %v49
    %v126 = vpop.f32.mrb[0].mxu0
    %v127 = vadd.f32 %v45, %v126
    %v128 = vpop.f32.mrb[0].mxu0
    %129 = vmatprep.mubr.f32.mxu0 0.0
    %130 = vmatmul.mubr.f32.gmra.mrb[0].mxu0 %v52
    %v131 = vpop.f32.mrb[0].mxu0
    %v132 = vadd.f32 %v45, %v131
    %v133 = vpop.f32.mrb[0].mxu0
    %134 = vmatprep.mubr.f32.mxu0 0.0
    %135 = vmatmul.mubr.f32.gmra.mrb[0].mxu0 %v55
    %v136 = vpop.f32.mrb[0].mxu0
    %v137 = vadd.f32 %v45, %v136
    %v138 = vpop.f32.mrb[0].mxu0
    %139 = vmatprep.mubr.f32.mxu0 0.0
    %140 = vmatmul.mubr.f32.gmra.mrb[0].mxu0 %v58
    %v141 = vpop.f32.mrb[0].mxu0
    %v142 = vadd.f32 %v45, %v141
    %v143 = vpop.f32.mrb[0].mxu0
    %144 = vdwg.mxu0
    %v145 = vmax.f32 %v127, 0.0
    %v146 = vmax.f32 %v132, 0.0
    %v147 = vmax.f32 %v137, 0.0
    %v148 = vmax.f32 %v142, 0.0
    %vm149 = vcmask 523264
    %150 = vst.msk [vmem:[#allocation5] sm:$0xff] %vm149, %v145
    %151 = vst.msk [vmem:[#allocation5 + $0x8] sm:$0xff] %vm149, %v146
    %152 = vst.msk [vmem:[#allocation5 + $0x10] sm:$0xff] %vm149, %v147
    %153 = vst.msk [vmem:[#allocation5 + $0x18] sm:$0xff] %vm149, %v148
    %v154 = vld [vmem:[#allocation2] sm:$0xff]
    %v155 = vld [vmem:[#allocation2 + $0x8] sm:$0xff]
    %v156 = vld [vmem:[#allocation2 + $0x10] sm:$0xff]
    %v157 = vld [vmem:[#allocation2 + $0x18] sm:$0xff]
    %v158 = vld [vmem:[#allocation2 + $0x20] sm:$0xff]
    %v159 = vld [vmem:[#allocation2 + $0x28] sm:$0xff]
    %v160 = vld [vmem:[#allocation2 + $0x30] sm:$0xff]
    %v161 = vld [vmem:[#allocation2 + $0x38] sm:$0xff]
    %v163 = vsel %vm149, %v145, 0
    %v166 = vsel %vm149, %v146, 0
    %v169 = vsel %vm149, %v147, 0
    %v172 = vsel %vm149, %v148, 0
    %174 = vmatprep.subr.mxu0 0.0
    %175 = vmatpush1.msra.mxu0 %v154
    %176 = vmatprep.subr.mxu0 0.0
    %177 = vmatpush1.msra.mxu0 %v155
    %178 = vmatprep.subr.mxu0 0.0
    %179 = vmatpush1.msra.mxu0 %v156
    %180 = vmatprep.subr.mxu0 0.0
    %181 = vmatpush1.msra.mxu0 %v157
    %182 = vmatprep.subr.mxu0 0.0
    %183 = vmatpush1.msra.mxu0 %v158
    %184 = vmatprep.subr.mxu0 0.0
    %185 = vmatpush1.msra.mxu0 %v159
    %186 = vmatprep.subr.mxu0 0.0
    %187 = vmatpush1.msra.mxu0 %v160
    %188 = vmatprep.subr.mxu0 0.0
    %189 = vmatpush1.msra.mxu0 %v161
    %190 = vmatprep.subr.mxu0 0.0
    %191 = vmatpush1.msra.mxu0 0.0
    %192 = vmatprep.subr.mxu0 0.0
    %193 = vmatpush1.msra.mxu0 0.0
    %194 = vmatprep.subr.mxu0 0.0
    %195 = vmatpush1.msra.mxu0 0.0
    %196 = vmatprep.subr.mxu0 0.0
    %197 = vmatpush1.msra.mxu0 0.0
    %198 = vmatprep.subr.mxu0 0.0
    %199 = vmatpush1.msra.mxu0 0.0
    %200 = vmatprep.subr.mxu0 0.0
    %201 = vmatpush1.msra.mxu0 0.0
    %202 = vmatprep.subr.mxu0 0.0
    %203 = vmatpush1.msra.mxu0 0.0
    %204 = vmatprep.subr.mxu0 0.0
    %205 = vmatpush1.msra.mxu0 0.0
    %206 = vmatprep.subr.mxu0 0.0
    %207 = vmatpush1.msra.mxu0 0.0
    %208 = vmatprep.subr.mxu0 0.0
    %209 = vmatpush1.msra.mxu0 0.0
    %210 = vmatprep.subr.mxu0 0.0
    %211 = vmatpush1.msra.mxu0 0.0
    %212 = vmatprep.subr.mxu0 0.0
    %213 = vmatpush1.msra.mxu0 0.0
    %214 = vmatprep.subr.mxu0 0.0
    %215 = vmatpush1.msra.mxu0 0.0
    %216 = vmatprep.subr.mxu0 0.0
    %217 = vmatpush1.msra.mxu0 0.0
    %218 = vmatprep.subr.mxu0 0.0
    %219 = vmatpush1.msra.mxu0 0.0
    %220 = vmatprep.subr.mxu0 0.0
    %221 = vmatpush1.msra.mxu0 0.0
    %222 = vmatprep.subr.mxu0 0.0
    %223 = vmatpush1.msra.mxu0 0.0
    %224 = vmatprep.subr.mxu0 0.0
    %225 = vmatpush1.msra.mxu0 0.0
    %226 = vmatprep.subr.mxu0 0.0
    %227 = vmatpush1.msra.mxu0 0.0
    %228 = vmatprep.subr.mxu0 0.0
    %229 = vmatpush1.msra.mxu0 0.0
    %230 = vmatprep.subr.mxu0 0.0
    %231 = vmatpush1.msra.mxu0 0.0
    %232 = vmatprep.subr.mxu0 0.0
    %233 = vmatpush1.msra.mxu0 0.0
    %234 = vmatprep.subr.mxu0 0.0
    %235 = vmatpush1.msra.mxu0 0.0
    %236 = vmatprep.subr.mxu0 0.0
    %237 = vmatpush1.msra.mxu0 0.0
    %238 = vmatprep.mubr.f32.mxu0 0.0
    %239 = vmatmul.mubr.f32.gmra.mrb[0].mxu0 %v163
    %v240 = vpop.f32.mrb[0].mxu0
    %v241 = vadd.f32 0.0, %v240
    %v242 = vpop.f32.mrb[0].mxu0
    %243 = vmatprep.mubr.f32.mxu0 0.0
    %244 = vmatmul.mubr.f32.gmra.mrb[0].mxu0 %v166
    %v245 = vpop.f32.mrb[0].mxu0
    %v246 = vadd.f32 0.0, %v245
    %v247 = vpop.f32.mrb[0].mxu0
    %248 = vmatprep.mubr.f32.mxu0 0.0
    %249 = vmatmul.mubr.f32.gmra.mrb[0].mxu0 %v169
    %v250 = vpop.f32.mrb[0].mxu0
    %v251 = vadd.f32 0.0, %v250
    %v252 = vpop.f32.mrb[0].mxu0
    %253 = vmatprep.mubr.f32.mxu0 0.0
    %254 = vmatmul.mubr.f32.gmra.mrb[0].mxu0 %v172
    %v255 = vpop.f32.mrb[0].mxu0
    %v256 = vadd.f32 0.0, %v255
    %v257 = vpop.f32.mrb[0].mxu0
    %258 = vdwg.mxu0
    %vm259 = vcmask 556032
    %260 = vst.msk [vmem:[#allocation6] sm:$0xff] %vm259, %v241
    %261 = vst.msk [vmem:[#allocation6 + $0x8] sm:$0xff] %vm259, %v246
    %262 = vst.msk [vmem:[#allocation6 + $0x10] sm:$0xff] %vm259, %v251
    %263 = vst.msk [vmem:[#allocation6 + $0x18] sm:$0xff] %vm259, %v256
    // Predicated region
    $region22: #{tpu_custom_call.1} parent=1 // pred_check
      _
    $region23: #{tpu_custom_call.1} parent=1 // pred_check_branch
      %265 = sbr.rel (0) target = $region25
    $region24: #{tpu_custom_call.1} parent=1 // pred_region
      %s267 = ssub.s32 512, 512
      %268 = vsyncadd [#allocation4], %s267
      %s269 = sshll.u32 [#allocation5], 4
      %s270 = int_to_ptr.vmem [resolvable:$true] %s269
      %275 = dma.vmem_to_hbm [thread:$0]  %s270, 512, %s4, [#allocation4], 128, 128, 8
    $region25: #{tpu_custom_call.1} parent=1 // pred_fallthru
      _
    // Predicated region
    $region26: #{tpu_custom_call.1} parent=1 // pred_check
      _
    $region27: #{tpu_custom_call.1} parent=1 // pred_check_branch
      %277 = sbr.rel (0) target = $region29
    $region28: #{tpu_custom_call.1} parent=1 // pred_region
      %s279 = ssub.s32 512, 512
      %280 = vsyncadd [#allocation7], %s279
      %s281 = sshll.u32 [#allocation6], 4
      %s282 = int_to_ptr.vmem [resolvable:$true] %s281
      %287 = dma.vmem_to_hbm [thread:$0]  %s282, 512, %s5, [#allocation7], 128, 128, 8
    $region29: #{tpu_custom_call.1} parent=1 // pred_fallthru
      _
    // Predicated region
    $region30: #{tpu_custom_call.1} parent=1 // pred_check
      _
    $region31: #{tpu_custom_call.1} parent=1 // pred_check_branch
      %289 = sbr.rel (0) target = $region33
    $region32: #{tpu_custom_call.1} parent=1 // pred_region
      %290 = dma.done [#allocation4], 512
    $region33: #{tpu_custom_call.1} parent=1 // pred_fallthru
      _
    // Predicated region
    $region34: #{tpu_custom_call.1} parent=1 // pred_check
      _
    $region35: #{tpu_custom_call.1} parent=1 // pred_check_branch
      %292 = sbr.rel (0) target = $region37
    $region36: #{tpu_custom_call.1} parent=1 // pred_region
      %293 = dma.done [#allocation7], 512
    $region37: #{tpu_custom_call.1} parent=1 // pred_fallthru
      _
    %294 = vsyncpa [#allocation3], 1
    %295 = vsyncpa [#allocation4], 1
    %296 = vsyncpa [#allocation7], 1

</llo_original>
